<compile_context>
chip_gen: v7x
topology: tpu7x:2x2x1
jax: 0.10.0
libtpu: 0.0.40
codegen_flags: <defaults>
</compile_context>

<pallas_src>
import functools

import jax
import jax.numpy as jnp
from jax.experimental import pallas as pl
from jax.experimental.pallas import tpu as pltpu


# ---------------------------------------------------------------------------
# Helpers
# ---------------------------------------------------------------------------

def _round_up(x, m):
    return (x + m - 1) // m * m


def _vmem_capacity_bytes():
    """Physical VMEM of the local TPU generation; conservative fallback."""
    try:
        cap = int(getattr(pltpu.get_tpu_info(), "vmem_capacity_bytes", 0))
        if cap > 0:
            return cap
    except Exception:
        pass
    return 64 << 20          # v7x-sized fallback (smallest current generation)


# Conservative peak-VMEM estimate per point row inside the kernel:
#   lane-padded (rows,3)/(rows,C_ir) f32 inputs, double-buffered   ~1.0 KiB
#   shared bf16 layer-1 scratch (rows, 64 -> 128 lanes)            ~0.25 KiB
#   f32 (rows,128) + bf16 copy + f32 (rows,256) activations        ~1.8 KiB
#   slack for pre/post-ReLU temporaries the compiler may keep      ~1.5 KiB
_BYTES_PER_ROW = 4608
_FIXED_VMEM = 3 << 20        # weights (default double-buffered), outputs, misc


def _plan_tiling(B, rows_per_batch, max_rows):
    """Pick (batch_tile, padded_batch).

    The batch tile is 8-aligned (sublane tile) unless it covers the whole
    batch; the batch is edge-padded up to a multiple of the tile so an odd /
    prime batch size never forces an oversized per-step tile.  For B >= 16
    the grid keeps >= 2 steps so the "parallel" axis can shard across v7x's
    two TensorCores.
    """
    bt_cap = max(1, max_rows // rows_per_batch)
    if B >= 16:
        bt_cap = min(bt_cap, B // 2)
    if B <= bt_cap:
        return B, B                          # single small tile
    if B < 8:
        return B, B                          # too small for sublane-aligned tiling
    bt = max(8, (min(bt_cap, B) // 8) * 8)
    return bt, _round_up(B, bt)


# ---------------------------------------------------------------------------
# Fused kernel: PointNet MLP + max-pool + projection + state MLP + concat
# ---------------------------------------------------------------------------

def _extractor_kernel(pc_ref, ir_ref, st_ref,
                      w1, b1, w2, b2, w3, b3, wp, bp,
                      sw1, sb1, sw2, sb2,
                      out_ref, h1_ref, *, bt, n_pc, n_ir, c_pc, out_ch):
    rows_pc = bt * n_pc

    # Hoisted weight-row loads / biases (JAX does not CSE broadcast_in_dim;
    # both layer-1 passes reuse these).
    w1x, w1y, w1z = w1[0:1, :], w1[1:2, :], w1[2:3, :]
    b1f, b2f, b3f = b1[...], b2[...], b3[...]

    def layer1(xf):
        # 3->64 on the VPU: K=3 is a degenerate MXU shape, so use three
        # broadcast FMAs.  ReLU in f32 (v5e has no bf16 VPU), cast to bf16
        # only for the MXU layers that follow.
        h = xf[:, 0:1] * w1x + xf[:, 1:2] * w1y + xf[:, 2:3] * w1z + b1f
        return jnp.maximum(h, 0.0).astype(jnp.bfloat16)

    # Both point sets share ONE bf16 layer-1 activation buffer so layers 2/3
    # run as a single MXU chain over bt*(Np+Mp) rows (one fill/drain per
    # layer instead of two; the tiny imagined-robot rows piggyback on the
    # main matmuls).
    h1_ref[:rows_pc, :] = layer1(pc_ref[...].astype(jnp.float32))
    h1_ref[rows_pc:, :] = layer1(ir_ref[:, :c_pc].astype(jnp.float32))

    # Layers 2/3 on the MXU: bf16 operands, f32 accumulation, f32 ReLU.
    h2 = jnp.maximum(
        jnp.dot(h1_ref[...], w2[...], preferred_element_type=jnp.float32)
        + b2f, 0.0)
    h3 = jnp.maximum(
        jnp.dot(h2.astype(jnp.bfloat16), w3[...],
                preferred_element_type=jnp.float32) + b3f, 0.0)

    # Per-batch max over the (point_cloud ∪ imagined_robot) point axis.
    # Point counts are multiples of 16 -> tile-aligned split/reshape, and
    # padding rows are duplicates of real points so the max is unchanged.
    ch = h3.shape[-1]
    g_pc = jnp.max(h3[:rows_pc].reshape(bt, n_pc, ch), axis=1)
    g_ir = jnp.max(h3[rows_pc:].reshape(bt, n_ir, ch), axis=1)
    g = jnp.maximum(g_pc, g_ir)

    # Final projection 256 -> out_ch (bf16 operands, f32 accumulation).
    pn = jnp.dot(g.astype(jnp.bfloat16), wp[...],
                 preferred_element_type=jnp.float32) + bp[...]

    # State MLP: Linear -> ReLU -> Linear (tiny; fused to avoid a 2nd call).
    s = st_ref[...].astype(jnp.bfloat16)
    sh = jnp.maximum(
        jnp.dot(s, sw1[...], preferred_element_type=jnp.float32) + sb1[...],
        0.0)
    sf = jnp.dot(sh.astype(jnp.bfloat16), sw2[...],
                 preferred_element_type=jnp.float32) + sb2[...]

    # Fused, lane-dense output tile: [pn_feat | state_feat] on disjoint lanes.
    out_ref[:, :out_ch] = pn
    out_ref[:, out_ch:] = sf


# ---------------------------------------------------------------------------
# Wrapper
# ---------------------------------------------------------------------------

def pointnet_imagination_extractor(observations, pn_params, state_params):
    """Pallas implementation of PointNetImaginationExtractor.forward."""
    points = observations["point_cloud"]          # (B, N, 3)
    imagin = observations["imagin_robot"]         # (B, M, C_ir), C_ir >= 3
    state = observations["agent_pos"]             # (B, D)
    assert points.ndim == 3 and points.shape[-1] == 3

    w1, b1, w2, b2, w3, b3, wp, bp = pn_params
    sw1, sb1, sw2, sb2 = state_params
    out_ch = wp.shape[1]
    st_out = sw2.shape[1]

    B, _, C = points.shape
    C_ir = imagin.shape[2]
    D = state.shape[1]

    # Pad point axes to a multiple of 16 (f32 sublane tile = 8, packed bf16
    # sublane tile = 16 for the shared layer-1 scratch) by repeating the last
    # point: duplicates leave the max-pool unchanged (no -inf masking).
    def _pad_points(x):
        n = x.shape[1]
        n_pad = _round_up(max(n, 16), 16)
        if n_pad != n:
            x = jnp.pad(x, ((0, 0), (0, n_pad - n), (0, 0)), mode="edge")
        return x, n_pad

    points, Np = _pad_points(points)
    imagin, Mp = _pad_points(imagin)
    rows_per_batch = Np + Mp

    # Generation-aware VMEM budget: v5e/v6e have 128 MiB physical VMEM, v7x
    # only 64 MiB, and the default *scoped* limits (16/32 MiB) are too small
    # for large tiles -> set vmem_limit_bytes explicitly and derive the
    # per-step row budget from it.
    vmem_cap = _vmem_capacity_bytes()
    vmem_limit = min(int(vmem_cap * 0.7), 100 << 20)
    row_cap = 12288 if vmem_cap >= (100 << 20) else 6144
    max_rows = min(row_cap,
                   max(512, (vmem_limit - _FIXED_VMEM) // _BYTES_PER_ROW))
    max_rows = (max_rows // 8) * 8

    bt, B_pad = _plan_tiling(B, rows_per_batch, max_rows)

    # If even the minimal tile exceeds the row budget (very dense per-batch
    # point clouds), grow the scoped-VMEM limit best-effort toward physical.
    # TODO(synk): tile the point axis (reduction grid dim + running max) for
    # point clouds whose single-batch activations exceed VMEM.
    needed = bt * rows_per_batch * _BYTES_PER_ROW + _FIXED_VMEM
    vmem_limit = max(vmem_limit, min(needed, int(vmem_cap * 0.9)))

    if B_pad != B:
        pb = B_pad - B
        points = jnp.pad(points, ((0, pb), (0, 0), (0, 0)), mode="edge")
        imagin = jnp.pad(imagin, ((0, pb), (0, 0), (0, 0)), mode="edge")
        state = jnp.pad(state, ((0, pb), (0, 0)), mode="edge")

    grid = (B_pad // bt,)

    # Free XLA reshapes -> flat row-major point tables.
    # NOTE: the (rows,3)/(rows,C_ir) f32 blocks are lane-padded to 128 lanes
    # in VMEM (~512 B/row, double-buffered); this tax is charged to
    # _BYTES_PER_ROW.  A transposed (C, rows) staging would shrink it but
    # forces bt*Np to be a multiple of 128; not worth it at current budgets.
    pc_flat = points.reshape(B_pad * Np, C)
    ir_flat = imagin.reshape(B_pad * Mp, C_ir)

    kernel = functools.partial(_extractor_kernel, bt=bt, n_pc=Np, n_ir=Mp,
                               c_pc=C, out_ch=out_ch)

    def _const(shape):
        # Constant weight/bias blocks.  pipeline_mode=pl.Buffered(1) would
        # drop their second pipeline buffer (~0.5 MiB); kept at the default
        # for portability and charged to _FIXED_VMEM instead.
        return pl.BlockSpec(shape, lambda i: (0, 0))

    out = pl.pallas_call(
        kernel,
        out_shape=jax.ShapeDtypeStruct((B_pad, out_ch + st_out), jnp.float32),
        grid=grid,
        in_specs=[
            pl.BlockSpec((bt * Np, C), lambda i: (i, 0)),
            pl.BlockSpec((bt * Mp, C_ir), lambda i: (i, 0)),
            pl.BlockSpec((bt, D), lambda i: (i, 0)),
            _const(w1.shape), _const(b1.shape),
            _const(w2.shape), _const(b2.shape),
            _const(w3.shape), _const(b3.shape),
            _const(wp.shape), _const(bp.shape),
            _const(sw1.shape), _const(sb1.shape),
            _const(sw2.shape), _const(sb2.shape),
        ],
        out_specs=pl.BlockSpec((bt, out_ch + st_out), lambda i: (i, 0)),
        scratch_shapes=[
            pltpu.VMEM((bt * rows_per_batch, w2.shape[0]), jnp.bfloat16)],
        compiler_params=pltpu.CompilerParams(
            dimension_semantics=("parallel",),
            vmem_limit_bytes=int(vmem_limit)),
    )(pc_flat, ir_flat, state,
      w1, b1,
      w2.astype(jnp.bfloat16), b2,
      w3.astype(jnp.bfloat16), b3,
      wp.astype(jnp.bfloat16), bp,
      sw1.astype(jnp.bfloat16), sb1,
      sw2.astype(jnp.bfloat16), sb2)

    return out[:B] if B_pad != B else out


# ---------------------------------------------------------------------------
# Pure-JAX f32 reference (for correctness check)
# ---------------------------------------------------------------------------

def _reference(observations, pn_params, state_params):
    points = observations["point_cloud"].astype(jnp.float32)
    img = observations["imagin_robot"][..., : points.shape[-1]].astype(jnp.float32)
    x = jnp.concatenate([points, img], axis=1)
    w1, b1, w2, b2, w3, b3, wp, bp = pn_params
    h = jax.nn.relu(x @ w1 + b1)
    h = jax.nn.relu(h @ w2 + b2)
    h = jax.nn.relu(h @ w3 + b3)
    g = jnp.max(h, axis=1)
    pn = g @ wp + bp
    sw1, sb1, sw2, sb2 = state_params
    s = observations["agent_pos"].astype(jnp.float32)
    sh = jax.nn.relu(s @ sw1 + sb1)
    sf = sh @ sw2 + sb2
    return jnp.concatenate([pn, sf], axis=-1)


# ---------------------------------------------------------------------------
# Deterministic parameter init + example run
# ---------------------------------------------------------------------------

def _init_linear(key, fan_in, fan_out):
    kw, kb = jax.random.split(key)
    scale = 1.0 / jnp.sqrt(fan_in)
    w = jax.random.uniform(kw, (fan_in, fan_out), jnp.float32, -scale, scale)
    b = jax.random.uniform(kb, (1, fan_out), jnp.float32, -scale, scale)
    return w, b


def _check(observations, pn_params, state_params, name):
    out = pointnet_imagination_extractor(observations, pn_params, state_params)
    out = jax.block_until_ready(out)
    ref = _reference(observations, pn_params, state_params)
    assert out.shape == ref.shape, (name, out.shape, ref.shape)
    # Tolerance loosened vs. the f32 reference because the MXU layers use
    # bf16 operands (f32 accumulation); bf16 rounding before the max can also
    # flip which (near-tied) point wins, hence the relaxed bound.
    err = float(jnp.max(jnp.abs(out - ref)))
    assert jnp.allclose(out, ref, atol=5e-2, rtol=5e-2), (
        f"{name}: mismatch vs reference, max abs err {err}")
    return out


if __name__ == "__main__":
    key = jax.random.PRNGKey(0)

    # Small synthetic shapes consistent with the module's forward.
    STATE_DIM = 10
    OUT_CHANNEL = 128          # PointNet encoder output dim
    STATE_OUT = 64             # state_mlp_size[-1]

    keys = jax.random.split(key, 16)

    # PointNetEncoderXYZ params: 3->64->128->256 MLP, then 256->OUT_CHANNEL.
    w1, b1 = _init_linear(keys[0], 3, 64)
    w2, b2 = _init_linear(keys[1], 64, 128)
    w3, b3 = _init_linear(keys[2], 128, 256)
    wp, bp = _init_linear(keys[3], 256, OUT_CHANNEL)
    pn_params = (w1, b1, w2, b2, w3, b3, wp, bp)

    # state_mlp: Linear(STATE_DIM->64) + ReLU + Linear(64->64).
    sw1, sb1 = _init_linear(keys[4], STATE_DIM, 64)
    sw2, sb2 = _init_linear(keys[5], 64, STATE_OUT)
    state_params = (sw1, sb1, sw2, sb2)

    # Case 1: tiny batch, single grid step (bt == B).
    obs1 = {
        "point_cloud": jax.random.normal(keys[6], (2, 16, 3), jnp.float32),
        "imagin_robot": jax.random.normal(keys[7], (2, 8, 7), jnp.float32),
        "agent_pos": jax.random.normal(keys[8], (2, STATE_DIM), jnp.float32),
    }
    _check(obs1, pn_params, state_params, "case1")

    # Case 2: non-multiple-of-8 batch -> exercises batch edge-padding,
    # 8-aligned batch tile, and the multi-step "parallel" grid.
    obs2 = {
        "point_cloud": jax.random.normal(keys[9], (20, 40, 3), jnp.float32),
        "imagin_robot": jax.random.normal(keys[10], (20, 10, 7), jnp.float32),
        "agent_pos": jax.random.normal(keys[11], (20, STATE_DIM), jnp.float32),
    }
    _check(obs2, pn_params, state_params, "case2")

    # TODO(synk): use_RGB / robomimic obs_encoder branch (external ResNet),
    # point_cloud_robot second extractor, and the alternative
    # pointnet2/pointnext/pointtransformer/voxelcnn extractors are not
    # implemented here (disabled in the default module configuration).
    print("KERNEL_OK")
</pallas_src>

<mosaic_0001>
module attributes {stable_mosaic.version = 11 : i64} {
  func.func @_extractor_kernel(%arg0: i32, %arg1: memref<32x3xf32, #tpu.memory_space<vmem>>, %arg2: memref<32x7xf32, #tpu.memory_space<vmem>>, %arg3: memref<2x10xf32, #tpu.memory_space<vmem>>, %arg4: memref<3x64xf32, #tpu.memory_space<vmem>>, %arg5: memref<1x64xf32, #tpu.memory_space<vmem>>, %arg6: memref<64x128xbf16, #tpu.memory_space<vmem>>, %arg7: memref<1x128xf32, #tpu.memory_space<vmem>>, %arg8: memref<128x256xbf16, #tpu.memory_space<vmem>>, %arg9: memref<1x256xf32, #tpu.memory_space<vmem>>, %arg10: memref<256x128xbf16, #tpu.memory_space<vmem>>, %arg11: memref<1x128xf32, #tpu.memory_space<vmem>>, %arg12: memref<10x64xbf16, #tpu.memory_space<vmem>>, %arg13: memref<1x64xf32, #tpu.memory_space<vmem>>, %arg14: memref<64x64xbf16, #tpu.memory_space<vmem>>, %arg15: memref<1x64xf32, #tpu.memory_space<vmem>>, %arg16: memref<2x192xf32, #tpu.memory_space<vmem>>, %arg17: memref<64x64xbf16, #tpu.memory_space<vmem>>) attributes {dimension_semantics = [#tpu.dimension_semantics<parallel>], iteration_bounds = array<i64: 1>, scalar_prefetch = 0 : i64, scratch_operands = 1 : i64, tpu.core_type = #tpu.core_type<tc>, window_params = [{transform_indices = @transform_0, window_bounds = array<i64: 32, 3>}, {transform_indices = @transform_1, window_bounds = array<i64: 32, 7>}, {transform_indices = @transform_2, window_bounds = array<i64: 2, 10>}, {pipeline_mode = #tpu.pipeline_mode<synchronous>, transform_indices = @transform_3, window_bounds = array<i64: 3, 64>}, {pipeline_mode = #tpu.pipeline_mode<synchronous>, transform_indices = @transform_4, window_bounds = array<i64: 1, 64>}, {pipeline_mode = #tpu.pipeline_mode<synchronous>, transform_indices = @transform_5, window_bounds = array<i64: 64, 128>}, {pipeline_mode = #tpu.pipeline_mode<synchronous>, transform_indices = @transform_6, window_bounds = array<i64: 1, 128>}, {pipeline_mode = #tpu.pipeline_mode<synchronous>, transform_indices = @transform_7, window_bounds = array<i64: 128, 256>}, {pipeline_mode = #tpu.pipeline_mode<synchronous>, transform_indices = @transform_8, window_bounds = array<i64: 1, 256>}, {pipeline_mode = #tpu.pipeline_mode<synchronous>, transform_indices = @transform_9, window_bounds = array<i64: 256, 128>}, {pipeline_mode = #tpu.pipeline_mode<synchronous>, transform_indices = @transform_10, window_bounds = array<i64: 1, 128>}, {pipeline_mode = #tpu.pipeline_mode<synchronous>, transform_indices = @transform_11, window_bounds = array<i64: 10, 64>}, {pipeline_mode = #tpu.pipeline_mode<synchronous>, transform_indices = @transform_12, window_bounds = array<i64: 1, 64>}, {pipeline_mode = #tpu.pipeline_mode<synchronous>, transform_indices = @transform_13, window_bounds = array<i64: 64, 64>}, {pipeline_mode = #tpu.pipeline_mode<synchronous>, transform_indices = @transform_14, window_bounds = array<i64: 1, 64>}, {transform_indices = @transform_15, window_bounds = array<i64: 2, 192>}]} {
    %c0 = arith.constant 0 : index
    %c0_0 = arith.constant 0 : index
    %0 = vector.load %arg4[%c0, %c0_0] : memref<3x64xf32, #tpu.memory_space<vmem>>, vector<1x64xf32>
    %c1 = arith.constant 1 : index
    %c0_1 = arith.constant 0 : index
    %1 = vector.load %arg4[%c1, %c0_1] : memref<3x64xf32, #tpu.memory_space<vmem>>, vector<1x64xf32>
    %c2 = arith.constant 2 : index
    %c0_2 = arith.constant 0 : index
    %2 = vector.load %arg4[%c2, %c0_2] : memref<3x64xf32, #tpu.memory_space<vmem>>, vector<1x64xf32>
    %c0_3 = arith.constant 0 : index
    %c0_4 = arith.constant 0 : index
    %3 = vector.load %arg5[%c0_3, %c0_4] : memref<1x64xf32, #tpu.memory_space<vmem>>, vector<1x64xf32>
    %c0_5 = arith.constant 0 : index
    %c0_6 = arith.constant 0 : index
    %4 = vector.load %arg7[%c0_5, %c0_6] : memref<1x128xf32, #tpu.memory_space<vmem>>, vector<1x128xf32>
    %c0_7 = arith.constant 0 : index
    %c0_8 = arith.constant 0 : index
    %5 = vector.load %arg9[%c0_7, %c0_8] : memref<1x256xf32, #tpu.memory_space<vmem>>, vector<1x256xf32>
    %c0_9 = arith.constant 0 : index
    %c0_10 = arith.constant 0 : index
    %6 = vector.load %arg1[%c0_9, %c0_10] : memref<32x3xf32, #tpu.memory_space<vmem>>, vector<32x3xf32>
    %7 = vector.extract_strided_slice %6 {offsets = [0, 0], sizes = [32, 1], strides = [1, 1]} : vector<32x3xf32> to vector<32x1xf32>
    %8 = vector.broadcast %7 : vector<32x1xf32> to vector<32x64xf32>
    %9 = vector.broadcast %0 : vector<1x64xf32> to vector<32x64xf32>
    %10 = arith.mulf %8, %9 : vector<32x64xf32>
    %11 = vector.extract_strided_slice %6 {offsets = [0, 1], sizes = [32, 1], strides = [1, 1]} : vector<32x3xf32> to vector<32x1xf32>
    %12 = vector.broadcast %11 : vector<32x1xf32> to vector<32x64xf32>
    %13 = vector.broadcast %1 : vector<1x64xf32> to vector<32x64xf32>
    %14 = arith.mulf %12, %13 : vector<32x64xf32>
    %15 = arith.addf %10, %14 : vector<32x64xf32>
    %16 = vector.extract_strided_slice %6 {offsets = [0, 2], sizes = [32, 1], strides = [1, 1]} : vector<32x3xf32> to vector<32x1xf32>
    %17 = vector.broadcast %16 : vector<32x1xf32> to vector<32x64xf32>
    %18 = vector.broadcast %2 : vector<1x64xf32> to vector<32x64xf32>
    %19 = arith.mulf %17, %18 : vector<32x64xf32>
    %20 = arith.addf %15, %19 : vector<32x64xf32>
    %21 = vector.broadcast %3 : vector<1x64xf32> to vector<32x64xf32>
    %22 = arith.addf %20, %21 : vector<32x64xf32>
    %cst = arith.constant 0.000000e+00 : f32
    %23 = vector.broadcast %cst : f32 to vector<32x64xf32>
    %24 = arith.maximumf %22, %23 : vector<32x64xf32>
    %25 = arith.truncf %24 : vector<32x64xf32> to vector<32x64xbf16>
    %c0_11 = arith.constant 0 : index
    %c0_12 = arith.constant 0 : index
    %26 = vector.load %arg17[%c0_11, %c0_12] : memref<64x64xbf16, #tpu.memory_space<vmem>>, vector<32x64xbf16>
    tpu.vector_store %arg17[%c0_11, %c0_12], %25 {strides = array<i32>} : memref<64x64xbf16, #tpu.memory_space<vmem>>, vector<32x64xbf16>,
    %c0_13 = arith.constant 0 : index
    %c0_14 = arith.constant 0 : index
    %27 = vector.load %arg2[%c0_13, %c0_14] : memref<32x7xf32, #tpu.memory_space<vmem>>, vector<32x3xf32>
    %28 = vector.extract_strided_slice %27 {offsets = [0, 0], sizes = [32, 1], strides = [1, 1]} : vector<32x3xf32> to vector<32x1xf32>
    %29 = vector.broadcast %28 : vector<32x1xf32> to vector<32x64xf32>
    %30 = vector.broadcast %0 : vector<1x64xf32> to vector<32x64xf32>
    %31 = arith.mulf %29, %30 : vector<32x64xf32>
    %32 = vector.extract_strided_slice %27 {offsets = [0, 1], sizes = [32, 1], strides = [1, 1]} : vector<32x3xf32> to vector<32x1xf32>
    %33 = vector.broadcast %32 : vector<32x1xf32> to vector<32x64xf32>
    %34 = vector.broadcast %1 : vector<1x64xf32> to vector<32x64xf32>
    %35 = arith.mulf %33, %34 : vector<32x64xf32>
    %36 = arith.addf %31, %35 : vector<32x64xf32>
    %37 = vector.extract_strided_slice %27 {offsets = [0, 2], sizes = [32, 1], strides = [1, 1]} : vector<32x3xf32> to vector<32x1xf32>
    %38 = vector.broadcast %37 : vector<32x1xf32> to vector<32x64xf32>
    %39 = vector.broadcast %2 : vector<1x64xf32> to vector<32x64xf32>
    %40 = arith.mulf %38, %39 : vector<32x64xf32>
    %41 = arith.addf %36, %40 : vector<32x64xf32>
    %42 = vector.broadcast %3 : vector<1x64xf32> to vector<32x64xf32>
    %43 = arith.addf %41, %42 : vector<32x64xf32>
    %cst_15 = arith.constant 0.000000e+00 : f32
    %44 = vector.broadcast %cst_15 : f32 to vector<32x64xf32>
    %45 = arith.maximumf %43, %44 : vector<32x64xf32>
    %46 = arith.truncf %45 : vector<32x64xf32> to vector<32x64xbf16>
    %c32 = arith.constant 32 : index
    %c0_16 = arith.constant 0 : index
    %47 = vector.load %arg17[%c32, %c0_16] : memref<64x64xbf16, #tpu.memory_space<vmem>>, vector<32x64xbf16>
    tpu.vector_store %arg17[%c32, %c0_16], %46 {strides = array<i32>} : memref<64x64xbf16, #tpu.memory_space<vmem>>, vector<32x64xbf16>,
    %c0_17 = arith.constant 0 : index
    %c0_18 = arith.constant 0 : index
    %48 = vector.load %arg17[%c0_17, %c0_18] : memref<64x64xbf16, #tpu.memory_space<vmem>>, vector<64x64xbf16>
    %c0_19 = arith.constant 0 : index
    %c0_20 = arith.constant 0 : index
    %49 = vector.load %arg6[%c0_19, %c0_20] : memref<64x128xbf16, #tpu.memory_space<vmem>>, vector<64x128xbf16>
    %cst_21 = arith.constant dense<0.000000e+00> : vector<64x128xf32>
    %50 = tpu.matmul %48, %49, %cst_21 {dimension_numbers = #tpu.dot_dimension_numbers<[1], [0], [0], [1], [0, 0, 1, 1], [], []>} : vector<64x64xbf16>, vector<64x128xbf16>, vector<64x128xf32> -> vector<64x128xf32>
    %51 = vector.broadcast %4 : vector<1x128xf32> to vector<64x128xf32>
    %52 = arith.addf %50, %51 : vector<64x128xf32>
    %cst_22 = arith.constant 0.000000e+00 : f32
    %53 = vector.broadcast %cst_22 : f32 to vector<64x128xf32>
    %54 = arith.maximumf %52, %53 : vector<64x128xf32>
    %55 = arith.truncf %54 : vector<64x128xf32> to vector<64x128xbf16>
    %c0_23 = arith.constant 0 : index
    %c0_24 = arith.constant 0 : index
    %56 = vector.load %arg8[%c0_23, %c0_24] : memref<128x256xbf16, #tpu.memory_space<vmem>>, vector<128x256xbf16>
    %cst_25 = arith.constant dense<0.000000e+00> : vector<64x256xf32>
    %57 = tpu.matmul %55, %56, %cst_25 {dimension_numbers = #tpu.dot_dimension_numbers<[1], [0], [0], [1], [0, 0, 1, 1], [], []>} : vector<64x128xbf16>, vector<128x256xbf16>, vector<64x256xf32> -> vector<64x256xf32>
    %58 = vector.broadcast %5 : vector<1x256xf32> to vector<64x256xf32>
    %59 = arith.addf %57, %58 : vector<64x256xf32>
    %cst_26 = arith.constant 0.000000e+00 : f32
    %60 = vector.broadcast %cst_26 : f32 to vector<64x256xf32>
    %61 = arith.maximumf %59, %60 : vector<64x256xf32>
    %62 = vector.extract_strided_slice %61 {offsets = [0, 0], sizes = [32, 256], strides = [1, 1]} : vector<64x256xf32> to vector<32x256xf32>
    %63 = vector.shape_cast %62 : vector<32x256xf32> to vector<2x16x256xf32>
    %cst_27 = arith.constant dense<0xFF800000> : vector<2x256xf32>
    %64 = vector.multi_reduction <maximumf>, %63, %cst_27 [1] : vector<2x16x256xf32> to vector<2x256xf32>
    %65 = vector.extract_strided_slice %61 {offsets = [32, 0], sizes = [32, 256], strides = [1, 1]} : vector<64x256xf32> to vector<32x256xf32>
    %66 = vector.shape_cast %65 : vector<32x256xf32> to vector<2x16x256xf32>
    %cst_28 = arith.constant dense<0xFF800000> : vector<2x256xf32>
    %67 = vector.multi_reduction <maximumf>, %66, %cst_28 [1] : vector<2x16x256xf32> to vector<2x256xf32>
    %68 = arith.maximumf %64, %67 : vector<2x256xf32>
    %69 = arith.truncf %68 : vector<2x256xf32> to vector<2x256xbf16>
    %c0_29 = arith.constant 0 : index
    %c0_30 = arith.constant 0 : index
    %70 = vector.load %arg10[%c0_29, %c0_30] : memref<256x128xbf16, #tpu.memory_space<vmem>>, vector<256x128xbf16>
    %cst_31 = arith.constant dense<0.000000e+00> : vector<2x128xf32>
    %71 = tpu.matmul %69, %70, %cst_31 {dimension_numbers = #tpu.dot_dimension_numbers<[1], [0], [0], [1], [0, 0, 1, 1], [], []>} : vector<2x256xbf16>, vector<256x128xbf16>, vector<2x128xf32> -> vector<2x128xf32>
    %c0_32 = arith.constant 0 : index
    %c0_33 = arith.constant 0 : index
    %72 = vector.load %arg11[%c0_32, %c0_33] : memref<1x128xf32, #tpu.memory_space<vmem>>, vector<1x128xf32>
    %73 = vector.broadcast %72 : vector<1x128xf32> to vector<2x128xf32>
    %74 = arith.addf %71, %73 : vector<2x128xf32>
    %c0_34 = arith.constant 0 : index
    %c0_35 = arith.constant 0 : index
    %75 = vector.load %arg3[%c0_34, %c0_35] : memref<2x10xf32, #tpu.memory_space<vmem>>, vector<2x10xf32>
    %76 = arith.truncf %75 : vector<2x10xf32> to vector<2x10xbf16>
    %c0_36 = arith.constant 0 : index
    %c0_37 = arith.constant 0 : index
    %77 = vector.load %arg12[%c0_36, %c0_37] : memref<10x64xbf16, #tpu.memory_space<vmem>>, vector<10x64xbf16>
    %cst_38 = arith.constant dense<0.000000e+00> : vector<2x64xf32>
    %78 = tpu.matmul %76, %77, %cst_38 {dimension_numbers = #tpu.dot_dimension_numbers<[1], [0], [0], [1], [0, 0, 1, 1], [], []>} : vector<2x10xbf16>, vector<10x64xbf16>, vector<2x64xf32> -> vector<2x64xf32>
    %c0_39 = arith.constant 0 : index
    %c0_40 = arith.constant 0 : index
    %79 = vector.load %arg13[%c0_39, %c0_40] : memref<1x64xf32, #tpu.memory_space<vmem>>, vector<1x64xf32>
    %80 = vector.broadcast %79 : vector<1x64xf32> to vector<2x64xf32>
    %81 = arith.addf %78, %80 : vector<2x64xf32>
    %cst_41 = arith.constant 0.000000e+00 : f32
    %82 = vector.broadcast %cst_41 : f32 to vector<2x64xf32>
    %83 = arith.maximumf %81, %82 : vector<2x64xf32>
    %84 = arith.truncf %83 : vector<2x64xf32> to vector<2x64xbf16>
    %c0_42 = arith.constant 0 : index
    %c0_43 = arith.constant 0 : index
    %85 = vector.load %arg14[%c0_42, %c0_43] : memref<64x64xbf16, #tpu.memory_space<vmem>>, vector<64x64xbf16>
    %cst_44 = arith.constant dense<0.000000e+00> : vector<2x64xf32>
    %86 = tpu.matmul %84, %85, %cst_44 {dimension_numbers = #tpu.dot_dimension_numbers<[1], [0], [0], [1], [0, 0, 1, 1], [], []>} : vector<2x64xbf16>, vector<64x64xbf16>, vector<2x64xf32> -> vector<2x64xf32>
    %c0_45 = arith.constant 0 : index
    %c0_46 = arith.constant 0 : index
    %87 = vector.load %arg15[%c0_45, %c0_46] : memref<1x64xf32, #tpu.memory_space<vmem>>, vector<1x64xf32>
    %88 = vector.broadcast %87 : vector<1x64xf32> to vector<2x64xf32>
    %89 = arith.addf %86, %88 : vector<2x64xf32>
    %c0_47 = arith.constant 0 : index
    %c0_48 = arith.constant 0 : index
    %90 = vector.load %arg16[%c0_47, %c0_48] : memref<2x192xf32, #tpu.memory_space<vmem>>, vector<2x128xf32>
    tpu.vector_store %arg16[%c0_47, %c0_48], %74 {strides = array<i32>} : memref<2x192xf32, #tpu.memory_space<vmem>>, vector<2x128xf32>,
    %c0_49 = arith.constant 0 : index
    %c128 = arith.constant 128 : index
    %91 = vector.load %arg16[%c0_49, %c128] : memref<2x192xf32, #tpu.memory_space<vmem>>, vector<2x64xf32>
    tpu.vector_store %arg16[%c0_49, %c128], %89 {strides = array<i32>} : memref<2x192xf32, #tpu.memory_space<vmem>>, vector<2x64xf32>,
    return
  }
  func.func @transform_0(%arg0: i32) -> (i32, i32) {
    %c0_i32 = arith.constant 0 : i32
    %c0_i32_0 = arith.constant 0 : i32
    return %arg0, %c0_i32 : i32, i32
  }
  func.func @transform_1(%arg0: i32) -> (i32, i32) {
    %c0_i32 = arith.constant 0 : i32
    %c0_i32_0 = arith.constant 0 : i32
    return %arg0, %c0_i32 : i32, i32
  }
  func.func @transform_2(%arg0: i32) -> (i32, i32) {
    %c0_i32 = arith.constant 0 : i32
    %c0_i32_0 = arith.constant 0 : i32
    return %arg0, %c0_i32 : i32, i32
  }
  func.func @transform_3(%arg0: i32) -> (i32, i32) {
    %c0_i32 = arith.constant 0 : i32
    %c0_i32_0 = arith.constant 0 : i32
    %c0_i32_1 = arith.constant 0 : i32
    return %c0_i32, %c0_i32_0 : i32, i32
  }
  func.func @transform_4(%arg0: i32) -> (i32, i32) {
    %c0_i32 = arith.constant 0 : i32
    %c0_i32_0 = arith.constant 0 : i32
    %c0_i32_1 = arith.constant 0 : i32
    return %c0_i32, %c0_i32_0 : i32, i32
  }
  func.func @transform_5(%arg0: i32) -> (i32, i32) {
    %c0_i32 = arith.constant 0 : i32
    %c0_i32_0 = arith.constant 0 : i32
    %c0_i32_1 = arith.constant 0 : i32
    return %c0_i32, %c0_i32_0 : i32, i32
  }
  func.func @transform_6(%arg0: i32) -> (i32, i32) {
    %c0_i32 = arith.constant 0 : i32
    %c0_i32_0 = arith.constant 0 : i32
    %c0_i32_1 = arith.constant 0 : i32
    return %c0_i32, %c0_i32_0 : i32, i32
  }
  func.func @transform_7(%arg0: i32) -> (i32, i32) {
    %c0_i32 = arith.constant 0 : i32
    %c0_i32_0 = arith.constant 0 : i32
    %c0_i32_1 = arith.constant 0 : i32
    return %c0_i32, %c0_i32_0 : i32, i32
  }
  func.func @transform_8(%arg0: i32) -> (i32, i32) {
    %c0_i32 = arith.constant 0 : i32
    %c0_i32_0 = arith.constant 0 : i32
    %c0_i32_1 = arith.constant 0 : i32
    return %c0_i32, %c0_i32_0 : i32, i32
  }
  func.func @transform_9(%arg0: i32) -> (i32, i32) {
    %c0_i32 = arith.constant 0 : i32
    %c0_i32_0 = arith.constant 0 : i32
    %c0_i32_1 = arith.constant 0 : i32
    return %c0_i32, %c0_i32_0 : i32, i32
  }
  func.func @transform_10(%arg0: i32) -> (i32, i32) {
    %c0_i32 = arith.constant 0 : i32
    %c0_i32_0 = arith.constant 0 : i32
    %c0_i32_1 = arith.constant 0 : i32
    return %c0_i32, %c0_i32_0 : i32, i32
  }
  func.func @transform_11(%arg0: i32) -> (i32, i32) {
    %c0_i32 = arith.constant 0 : i32
    %c0_i32_0 = arith.constant 0 : i32
    %c0_i32_1 = arith.constant 0 : i32
    return %c0_i32, %c0_i32_0 : i32, i32
  }
  func.func @transform_12(%arg0: i32) -> (i32, i32) {
    %c0_i32 = arith.constant 0 : i32
    %c0_i32_0 = arith.constant 0 : i32
    %c0_i32_1 = arith.constant 0 : i32
    return %c0_i32, %c0_i32_0 : i32, i32
  }
  func.func @transform_13(%arg0: i32) -> (i32, i32) {
    %c0_i32 = arith.constant 0 : i32
    %c0_i32_0 = arith.constant 0 : i32
    %c0_i32_1 = arith.constant 0 : i32
    return %c0_i32, %c0_i32_0 : i32, i32
  }
  func.func @transform_14(%arg0: i32) -> (i32, i32) {
    %c0_i32 = arith.constant 0 : i32
    %c0_i32_0 = arith.constant 0 : i32
    %c0_i32_1 = arith.constant 0 : i32
    return %c0_i32, %c0_i32_0 : i32, i32
  }
  func.func @transform_15(%arg0: i32) -> (i32, i32) {
    %c0_i32 = arith.constant 0 : i32
    %c0_i32_0 = arith.constant 0 : i32
    return %arg0, %c0_i32 : i32, i32
  }
}

</mosaic_0001>

<llo_original>
// kernel: tpu_custom_call.1
$region0: #{tpu_custom_call.1}
  #allocation0 [shape = 'u32[]', space=smem, size = 0x4, offset = 0x4, fixed_abs, tag = 'smem constant byte address 0x4 - core index']
  #allocation1 [shape = 'u32[144,128]{1,0:T(1,128)}', space=vmem, size = 0x12000, scoped, tag = 'internal scratch']
  #allocation2 [shape = 'bf16[64,64]{1,0:T(16,128)(2,1)}', space=vmem, size = 0x4000, scoped, tag = 'scratch operand']
  %s0 = inlined_call_operand.vmem [shape: f32[32,3], index: 0, kind: input, shape index: {}]
  %s1 = inlined_call_operand.vmem [shape: f32[32,7], index: 1, kind: input, shape index: {}]
  %s2 = inlined_call_operand.vmem [shape: f32[2,10], index: 2, kind: input, shape index: {}]
  %s3 = inlined_call_operand.vmem [shape: f32[3,64], index: 3, kind: input, shape index: {}]
  %s4 = inlined_call_operand.vmem [shape: f32[1,64], index: 4, kind: input, shape index: {}]
  %s5 = inlined_call_operand.vmem [shape: bf16[64,128], index: 5, kind: input, shape index: {}]
  %s6 = inlined_call_operand.vmem [shape: f32[1,128], index: 6, kind: input, shape index: {}]
  %s7 = inlined_call_operand.hbm [shape: bf16[128,256], index: 7, kind: input, shape index: {}]
  %s8 = inlined_call_operand.vmem [shape: f32[1,256], index: 8, kind: input, shape index: {}]
  %s9 = inlined_call_operand.hbm [shape: bf16[256,128], index: 9, kind: input, shape index: {}]
  %s10 = inlined_call_operand.vmem [shape: f32[1,128], index: 10, kind: input, shape index: {}]
  %s11 = inlined_call_operand.vmem [shape: bf16[10,64], index: 11, kind: input, shape index: {}]
  %s12 = inlined_call_operand.vmem [shape: f32[1,64], index: 12, kind: input, shape index: {}]
  %s13 = inlined_call_operand.vmem [shape: bf16[64,64], index: 13, kind: input, shape index: {}]
  %s14 = inlined_call_operand.vmem [shape: f32[1,64], index: 14, kind: input, shape index: {}]
  %s15 = inlined_call_operand.hbm [shape: f32[2,192], index: 15, kind: output, shape index: {}]
  %s16 = sld [smem:[#allocation0]]
  $region78: #{tpu_custom_call.1} parent=0
    _
  %s18 = ssub.s32 1, %s16
  %s19 = scalar_select 0, %s18, %s16
  $region1: #{tpu_custom_call.1} parent=0
    #allocation3 [shape = 'u8[65536]{0}', space=vmem, size = 0x10000, scoped, tag = 'input window, operand 7, single buffered']
    #allocation4 [shape = 's32[1]{0}', space=sflag, size = 0x4, scoped, tag = 'scoped memory for tpu_custom_call.1']
    #allocation5 [shape = 's32[1]{0}', space=sflag, size = 0x4, scoped, tag = 'scoped memory for tpu_custom_call.1']
    #allocation6 [shape = 'u8[65536]{0}', space=vmem, size = 0x10000, scoped, tag = 'input window, operand 9, single buffered']
    #allocation7 [shape = 's32[1]{0}', space=sflag, size = 0x4, scoped, tag = 'scoped memory for tpu_custom_call.1']
    #allocation8 [shape = 'u8[2048]{0}', space=vmem, size = 0x800, scoped, tag = 'output window, operand 0, single buffered']
    %20 = vsyncpa [#allocation4], 0
    %21 = vsyncpa [#allocation7], 0
    %22 = vsyncpa [#allocation5], 0
    // Predicated region
    $region2: #{tpu_custom_call.1} parent=1 // pred_check
      _
    $region3: #{tpu_custom_call.1} parent=1 // pred_check_branch
      %24 = sbr.rel (0) target = $region5
    $region4: #{tpu_custom_call.1} parent=1 // pred_region
      _
    $region5: #{tpu_custom_call.1} parent=1 // pred_fallthru
      _
    // Predicated region
    $region6: #{tpu_custom_call.1} parent=1 // pred_check
      _
    $region7: #{tpu_custom_call.1} parent=1 // pred_check_branch
      %26 = sbr.rel (0) target = $region9
    $region8: #{tpu_custom_call.1} parent=1 // pred_region
      _
    $region9: #{tpu_custom_call.1} parent=1 // pred_fallthru
      _
    // Predicated region
    $region10: #{tpu_custom_call.1} parent=1 // pred_check
      _
    $region11: #{tpu_custom_call.1} parent=1 // pred_check_branch
      %28 = sbr.rel (0) target = $region13
    $region12: #{tpu_custom_call.1} parent=1 // pred_region
      _
    $region13: #{tpu_custom_call.1} parent=1 // pred_fallthru
      _
    // Predicated region
    $region14: #{tpu_custom_call.1} parent=1 // pred_check
      _
    $region15: #{tpu_custom_call.1} parent=1 // pred_check_branch
      %30 = sbr.rel (0) target = $region17
    $region16: #{tpu_custom_call.1} parent=1 // pred_region
      _
    $region17: #{tpu_custom_call.1} parent=1 // pred_fallthru
      _
    // Predicated region
    $region18: #{tpu_custom_call.1} parent=1 // pred_check
      _
    $region19: #{tpu_custom_call.1} parent=1 // pred_check_branch
      %32 = sbr.rel (0) target = $region21
    $region20: #{tpu_custom_call.1} parent=1 // pred_region
      _
    $region21: #{tpu_custom_call.1} parent=1 // pred_fallthru
      _
    // Predicated region
    $region22: #{tpu_custom_call.1} parent=1 // pred_check
      _
    $region23: #{tpu_custom_call.1} parent=1 // pred_check_branch
      %34 = sbr.rel (0) target = $region25
    $region24: #{tpu_custom_call.1} parent=1 // pred_region
      _
    $region25: #{tpu_custom_call.1} parent=1 // pred_fallthru
      _
    // Predicated region
    $region26: #{tpu_custom_call.1} parent=1 // pred_check
      _
    $region27: #{tpu_custom_call.1} parent=1 // pred_check_branch
      %36 = sbr.rel (0) target = $region29
    $region28: #{tpu_custom_call.1} parent=1 // pred_region
      _
    $region29: #{tpu_custom_call.1} parent=1 // pred_fallthru
      _
    // Predicated region
    $region30: #{tpu_custom_call.1} parent=1 // pred_check
      _
    $region31: #{tpu_custom_call.1} parent=1 // pred_check_branch
      %38 = sbr.rel (0) target = $region33
    $region32: #{tpu_custom_call.1} parent=1 // pred_region
      %s40 = ssub.s32 2048, 2048
      %41 = vsyncadd [#allocation4], %s40
      %s42 = sshll.u32 [#allocation3], 4
      %s43 = int_to_ptr.vmem [resolvable:$true] %s42
      %48 = dma.hbm_to_vmem [thread:$0]  %s7, 2048, %s43, [#allocation4], 128, 128, 8
    $region33: #{tpu_custom_call.1} parent=1 // pred_fallthru
      _
    // Predicated region
    $region34: #{tpu_custom_call.1} parent=1 // pred_check
      _
    $region35: #{tpu_custom_call.1} parent=1 // pred_check_branch
      %50 = sbr.rel (0) target = $region37
    $region36: #{tpu_custom_call.1} parent=1 // pred_region
      _
    $region37: #{tpu_custom_call.1} parent=1 // pred_fallthru
      _
    // Predicated region
    $region38: #{tpu_custom_call.1} parent=1 // pred_check
      _
    $region39: #{tpu_custom_call.1} parent=1 // pred_check_branch
      %52 = sbr.rel (0) target = $region41
    $region40: #{tpu_custom_call.1} parent=1 // pred_region
      %s54 = ssub.s32 2048, 2048
      %55 = vsyncadd [#allocation7], %s54
      %s56 = sshll.u32 [#allocation6], 4
      %s57 = int_to_ptr.vmem [resolvable:$true] %s56
      %62 = dma.hbm_to_vmem [thread:$0]  %s9, 2048, %s57, [#allocation7], 64, 64, 4
    $region41: #{tpu_custom_call.1} parent=1 // pred_fallthru
      _
    // Predicated region
    $region42: #{tpu_custom_call.1} parent=1 // pred_check
      _
    $region43: #{tpu_custom_call.1} parent=1 // pred_check_branch
      %64 = sbr.rel (0) target = $region45
    $region44: #{tpu_custom_call.1} parent=1 // pred_region
      _
    $region45: #{tpu_custom_call.1} parent=1 // pred_fallthru
      _
    // Predicated region
    $region46: #{tpu_custom_call.1} parent=1 // pred_check
      _
    $region47: #{tpu_custom_call.1} parent=1 // pred_check_branch
      %66 = sbr.rel (0) target = $region49
    $region48: #{tpu_custom_call.1} parent=1 // pred_region
      _
    $region49: #{tpu_custom_call.1} parent=1 // pred_fallthru
      _
    // Predicated region
    $region50: #{tpu_custom_call.1} parent=1 // pred_check
      _
    $region51: #{tpu_custom_call.1} parent=1 // pred_check_branch
      %68 = sbr.rel (0) target = $region53
    $region52: #{tpu_custom_call.1} parent=1 // pred_region
      _
    $region53: #{tpu_custom_call.1} parent=1 // pred_fallthru
      _
    // Predicated region
    $region54: #{tpu_custom_call.1} parent=1 // pred_check
      _
    $region55: #{tpu_custom_call.1} parent=1 // pred_check_branch
      %70 = sbr.rel (0) target = $region57
    $region56: #{tpu_custom_call.1} parent=1 // pred_region
      _
    $region57: #{tpu_custom_call.1} parent=1 // pred_fallthru
      _
    // Predicated region
    $region58: #{tpu_custom_call.1} parent=1 // pred_check
      _
    $region59: #{tpu_custom_call.1} parent=1 // pred_check_branch
      %72 = sbr.rel (0) target = $region61
    $region60: #{tpu_custom_call.1} parent=1 // pred_region
      _
    $region61: #{tpu_custom_call.1} parent=1 // pred_fallthru
      _
    // Predicated region
    $region62: #{tpu_custom_call.1} parent=1 // pred_check
      _
    $region63: #{tpu_custom_call.1} parent=1 // pred_check_branch
      %74 = sbr.rel (0) target = $region65
    $region64: #{tpu_custom_call.1} parent=1 // pred_region
      %75 = dma.done [#allocation4], 2048
    $region65: #{tpu_custom_call.1} parent=1 // pred_fallthru
      _
    // Predicated region
    $region66: #{tpu_custom_call.1} parent=1 // pred_check
      _
    $region67: #{tpu_custom_call.1} parent=1 // pred_check_branch
      %77 = sbr.rel (0) target = $region69
    $region68: #{tpu_custom_call.1} parent=1 // pred_region
      %78 = dma.done [#allocation7], 2048
    $region69: #{tpu_custom_call.1} parent=1 // pred_fallthru
      _
    %v80 = vld [vmem:[%s3] sm:$0x1]
    %v81 = vld [vmem:[%s3 + $0x1] sm:$0x1]
    %v82 = vld [vmem:[%s3 + $0x2] sm:$0x1]
    %v83 = vld [vmem:[%s4] sm:$0x1]
    %v84 = vld [vmem:[%s6] sm:$0x1]
    %v85 = vld [vmem:[%s8] sm:$0x3]
    %v86 = vld [vmem:[%s0] sm:$0xff]
    %v87 = vld [vmem:[%s0 + $0x8] sm:$0xff]
    %v88 = vld [vmem:[%s0 + $0x10] sm:$0xff]
    %v89 = vld [vmem:[%s0 + $0x18] sm:$0xff]
    %91 = vset.pattern.permute.xlu0 0
    %92 = vperm.xlu0 %91, %v86
    %v93 = vpop.permute.xlu0 %92
    %96 = vset.pattern.permute.xlu0 0
    %97 = vperm.xlu0 %96, %v87
    %v98 = vpop.permute.xlu0 %97
    %101 = vset.pattern.permute.xlu0 0
    %102 = vperm.xlu0 %101, %v88
    %v103 = vpop.permute.xlu0 %102
    %106 = vset.pattern.permute.xlu0 0
    %107 = vperm.xlu0 %106, %v89
    %v108 = vpop.permute.xlu0 %107
    %v110 = vlaneseq
    %v111 = vshrl.u32 %v110, 7
    %v112 = vsub.s32 0, %v111
    %v113 = vrot.slane %v80, %v112
    %v114 = vmul.f32 %v93, %v113
    %v115 = vmul.f32 %v98, %v113
    %v116 = vmul.f32 %v103, %v113
    %v117 = vmul.f32 %v108, %v113
    %118 = vset.pattern.permute.xlu0 1
    %119 = vperm.xlu0 %118, %v86
    %v120 = vpop.permute.xlu0 %119
    %122 = vset.pattern.permute.xlu0 1
    %123 = vperm.xlu0 %122, %v87
    %v124 = vpop.permute.xlu0 %123
    %126 = vset.pattern.permute.xlu0 1
    %127 = vperm.xlu0 %126, %v88
    %v128 = vpop.permute.xlu0 %127
    %130 = vset.pattern.permute.xlu0 1
    %131 = vperm.xlu0 %130, %v89
    %v132 = vpop.permute.xlu0 %131
    %v134 = vlaneseq
    %v135 = vshrl.u32 %v134, 7
    %v136 = vsub.s32 0, %v135
    %v137 = vrot.slane %v81, %v136
    %v138 = vmul.f32 %v120, %v137
    %v139 = vmul.f32 %v124, %v137
    %v140 = vmul.f32 %v128, %v137
    %v141 = vmul.f32 %v132, %v137
    %v142 = vadd.f32 %v114, %v138
    %v143 = vadd.f32 %v115, %v139
    %v144 = vadd.f32 %v116, %v140
    %v145 = vadd.f32 %v117, %v141
    %146 = vset.pattern.permute.xlu0 2
    %147 = vperm.xlu0 %146, %v86
    %v148 = vpop.permute.xlu0 %147
    %150 = vset.pattern.permute.xlu0 2
    %151 = vperm.xlu0 %150, %v87
    %v152 = vpop.permute.xlu0 %151
    %154 = vset.pattern.permute.xlu0 2
    %155 = vperm.xlu0 %154, %v88
    %v156 = vpop.permute.xlu0 %155
    %158 = vset.pattern.permute.xlu0 2
    %159 = vperm.xlu0 %158, %v89
    %v160 = vpop.permute.xlu0 %159
    %v162 = vlaneseq
    %v163 = vshrl.u32 %v162, 7
    %v164 = vsub.s32 0, %v163
    %v165 = vrot.slane %v82, %v164
    %v166 = vmul.f32 %v148, %v165
    %v167 = vmul.f32 %v152, %v165
    %v168 = vmul.f32 %v156, %v165
    %v169 = vmul.f32 %v160, %v165
    %v170 = vadd.f32 %v142, %v166
    %v171 = vadd.f32 %v143, %v167
    %v172 = vadd.f32 %v144, %v168
    %v173 = vadd.f32 %v145, %v169
    %v175 = vlaneseq
    %v176 = vshrl.u32 %v175, 7
    %v177 = vsub.s32 0, %v176
    %v178 = vrot.slane %v83, %v177
    %v180 = vadd.f32 %v170, %v178
    %v181 = vadd.f32 %v171, %v178
    %v182 = vadd.f32 %v172, %v178
    %v183 = vadd.f32 %v173, %v178
    %v184 = vmax.f32 %v180, 0.0
    %v185 = vmax.f32 %v181, 0.0
    %v186 = vmax.f32 %v182, 0.0
    %v187 = vmax.f32 %v183, 0.0
    %v188 = vpack.c.bf16 %v185, %v184
    %v189 = vpack.c.bf16 %v187, %v186
    %vm190 = vcmask 523264
    %191 = vst.msk [vmem:[#allocation2] sm:$0xff] %vm190, %v188
    %192 = vst.msk [vmem:[#allocation2 + $0x8] sm:$0xff] %vm190, %v189
    %v193 = vld [vmem:[%s1] sm:$0xff]
    %v194 = vld [vmem:[%s1 + $0x8] sm:$0xff]
    %v195 = vld [vmem:[%s1 + $0x10] sm:$0xff]
    %v196 = vld [vmem:[%s1 + $0x18] sm:$0xff]
    %198 = vset.pattern.permute.xlu0 0
    %199 = vperm.xlu0 %198, %v193
    %v200 = vpop.permute.xlu0 %199
    %203 = vset.pattern.permute.xlu0 0
    %204 = vperm.xlu0 %203, %v194
    %v205 = vpop.permute.xlu0 %204
    %208 = vset.pattern.permute.xlu0 0
    %209 = vperm.xlu0 %208, %v195
    %v210 = vpop.permute.xlu0 %209
    %213 = vset.pattern.permute.xlu0 0
    %214 = vperm.xlu0 %213, %v196
    %v215 = vpop.permute.xlu0 %214
    %v217 = vmul.f32 %v200, %v113
    %v218 = vmul.f32 %v205, %v113
    %v219 = vmul.f32 %v210, %v113
    %v220 = vmul.f32 %v215, %v113
    %221 = vset.pattern.permute.xlu0 1
    %222 = vperm.xlu0 %221, %v193
    %v223 = vpop.permute.xlu0 %222
    %225 = vset.pattern.permute.xlu0 1
    %226 = vperm.xlu0 %225, %v194
    %v227 = vpop.permute.xlu0 %226
    %229 = vset.pattern.permute.xlu0 1
    %230 = vperm.xlu0 %229, %v195
    %v231 = vpop.permute.xlu0 %230
    %233 = vset.pattern.permute.xlu0 1
    %234 = vperm.xlu0 %233, %v196
    %v235 = vpop.permute.xlu0 %234
    %v237 = vmul.f32 %v223, %v137
    %v238 = vmul.f32 %v227, %v137
    %v239 = vmul.f32 %v231, %v137
    %v240 = vmul.f32 %v235, %v137
    %v241 = vadd.f32 %v217, %v237
    %v242 = vadd.f32 %v218, %v238
    %v243 = vadd.f32 %v219, %v239
    %v244 = vadd.f32 %v220, %v240
    %245 = vset.pattern.permute.xlu0 2
    %246 = vperm.xlu0 %245, %v193
    %v247 = vpop.permute.xlu0 %246
    %249 = vset.pattern.permute.xlu0 2
    %250 = vperm.xlu0 %249, %v194
    %v251 = vpop.permute.xlu0 %250
    %253 = vset.pattern.permute.xlu0 2
    %254 = vperm.xlu0 %253, %v195
    %v255 = vpop.permute.xlu0 %254
    %257 = vset.pattern.permute.xlu0 2
    %258 = vperm.xlu0 %257, %v196
    %v259 = vpop.permute.xlu0 %258
    %v261 = vmul.f32 %v247, %v165
    %v262 = vmul.f32 %v251, %v165
    %v263 = vmul.f32 %v255, %v165
    %v264 = vmul.f32 %v259, %v165
    %v265 = vadd.f32 %v241, %v261
    %v266 = vadd.f32 %v242, %v262
    %v267 = vadd.f32 %v243, %v263
    %v268 = vadd.f32 %v244, %v264
    %v269 = vadd.f32 %v265, %v178
    %v270 = vadd.f32 %v266, %v178
    %v271 = vadd.f32 %v267, %v178
    %v272 = vadd.f32 %v268, %v178
    %v273 = vmax.f32 %v269, 0.0
    %v274 = vmax.f32 %v270, 0.0
    %v275 = vmax.f32 %v271, 0.0
    %v276 = vmax.f32 %v272, 0.0
    %v277 = vpack.c.bf16 %v274, %v273
    %v278 = vpack.c.bf16 %v276, %v275
    %279 = vst.msk [vmem:[#allocation2 + $0x10] sm:$0xff] %vm190, %v277
    %280 = vst.msk [vmem:[#allocation2 + $0x18] sm:$0xff] %vm190, %v278
    %v281 = vld [vmem:[#allocation2] sm:$0xff]
    %v282 = vld [vmem:[#allocation2 + $0x8] sm:$0xff]
    %v283 = vld [vmem:[#allocation2 + $0x10] sm:$0xff]
    %v284 = vld [vmem:[#allocation2 + $0x18] sm:$0xff]
    %v285 = vld [vmem:[%s5] sm:$0xf]
    %v286 = vld [vmem:[%s5 + $0x4] sm:$0xf]
    %v287 = vld [vmem:[%s5 + $0x8] sm:$0xf]
    %v288 = vld [vmem:[%s5 + $0xc] sm:$0xf]
    %v289 = vld [vmem:[%s5 + $0x10] sm:$0xf]
    %v290 = vld [vmem:[%s5 + $0x14] sm:$0xf]
    %v291 = vld [vmem:[%s5 + $0x18] sm:$0xf]
    %v292 = vld [vmem:[%s5 + $0x1c] sm:$0xf]
    %v294 = vlaneseq
    %v295 = vshrl.u32 %v294, 7
    %v296 = vsub.s32 0, %v295
    %v297 = vrot.slane %v84, %v296
    %v307 = vunpack.c.l.b16 %v285
    %v308 = vunpack.c.l.b16 %v286
    %v309 = vunpack.c.l.b16 %v287
    %v310 = vunpack.c.l.b16 %v288
    %v311 = vunpack.c.l.b16 %v289
    %v312 = vunpack.c.l.b16 %v290
    %v313 = vunpack.c.l.b16 %v291
    %v314 = vunpack.c.l.b16 %v292
    %v315 = vpack.c.b16 %v308, %v307
    %v316 = vpack.c.b16 %v310, %v309
    %v317 = vpack.c.b16 %v312, %v311
    %v318 = vpack.c.b16 %v314, %v313
    %v324 = vsel %vm190, %v281, 0
    %v327 = vsel %vm190, %v282, 0
    %v330 = vsel %vm190, %v283, 0
    %v333 = vsel %vm190, %v284, 0
    %335 = vmatprep.subr.bf16.mxu0 0
    %336 = vmatpush1.bf16.msra.mxu0 %v315
    %337 = vmatprep.subr.bf16.mxu0 0
    %338 = vmatpush1.bf16.msra.mxu0 %v316
    %339 = vmatprep.subr.bf16.mxu0 0
    %340 = vmatpush1.bf16.msra.mxu0 %v317
    %341 = vmatprep.subr.bf16.mxu0 0
    %342 = vmatpush1.bf16.msra.mxu0 %v318
    %343 = vmatprep.subr.bf16.mxu0 0
    %344 = vmatpush1.bf16.msra.mxu0 0
    %345 = vmatprep.subr.bf16.mxu0 0
    %346 = vmatpush1.bf16.msra.mxu0 0
    %347 = vmatprep.subr.bf16.mxu0 0
    %348 = vmatpush1.bf16.msra.mxu0 0
    %349 = vmatprep.subr.bf16.mxu0 0
    %350 = vmatpush1.bf16.msra.mxu0 0
    %351 = vmatprep.subr.bf16.mxu0 0
    %352 = vmatpush1.bf16.msra.mxu0 0
    %353 = vmatprep.subr.bf16.mxu0 0
    %354 = vmatpush1.bf16.msra.mxu0 0
    %355 = vmatprep.subr.bf16.mxu0 0
    %356 = vmatpush1.bf16.msra.mxu0 0
    %357 = vmatprep.subr.bf16.mxu0 0
    %358 = vmatpush1.bf16.msra.mxu0 0
    %359 = vmatprep.subr.bf16.mxu0 0
    %360 = vmatpush1.bf16.msra.mxu0 0
    %361 = vmatprep.subr.bf16.mxu0 0
    %362 = vmatpush1.bf16.msra.mxu0 0
    %363 = vmatprep.subr.bf16.mxu0 0
    %364 = vmatpush1.bf16.msra.mxu0 0
    %365 = vmatprep.subr.bf16.mxu0 0
    %366 = vmatpush1.bf16.msra.mxu0 0
    %367 = vmatprep.mubr.bf16.mxu0 0
    %368 = vmatmul.mubr.bf16.gmra.mrb[0].mxu0 %v324
    %v369 = vpop.f32.mrb[0].mxu0
    %v370 = vadd.f32 %v297, %v369
    %v371 = vpop.f32.mrb[0].mxu0
    %v372 = vpop.f32.mrb[0].mxu0
    %v373 = vadd.f32 %v297, %v372
    %v374 = vpop.f32.mrb[0].mxu0
    %375 = vmatprep.mubr.bf16.mxu0 0
    %376 = vmatmul.mubr.bf16.gmra.mrb[0].mxu0 %v327
    %v377 = vpop.f32.mrb[0].mxu0
    %v378 = vadd.f32 %v297, %v377
    %v379 = vpop.f32.mrb[0].mxu0
    %v380 = vpop.f32.mrb[0].mxu0
    %v381 = vadd.f32 %v297, %v380
    %v382 = vpop.f32.mrb[0].mxu0
    %383 = vmatprep.mubr.bf16.mxu0 0
    %384 = vmatmul.mubr.bf16.gmra.mrb[0].mxu0 %v330
    %v385 = vpop.f32.mrb[0].mxu0
    %v386 = vadd.f32 %v297, %v385
    %v387 = vpop.f32.mrb[0].mxu0
    %v388 = vpop.f32.mrb[0].mxu0
    %v389 = vadd.f32 %v297, %v388
    %v390 = vpop.f32.mrb[0].mxu0
    %391 = vmatprep.mubr.bf16.mxu0 0
    %392 = vmatmul.mubr.bf16.gmra.mrb[0].mxu0 %v333
    %v393 = vpop.f32.mrb[0].mxu0
    %v394 = vadd.f32 %v297, %v393
    %v395 = vpop.f32.mrb[0].mxu0
    %v396 = vpop.f32.mrb[0].mxu0
    %v397 = vadd.f32 %v297, %v396
    %v398 = vpop.f32.mrb[0].mxu0
    %399 = vdwg.mxu0
    %v400 = vmax.f32 %v370, 0.0
    %v401 = vmax.f32 %v373, 0.0
    %v402 = vmax.f32 %v378, 0.0
    %v403 = vmax.f32 %v381, 0.0
    %v404 = vmax.f32 %v386, 0.0
    %v405 = vmax.f32 %v389, 0.0
    %v406 = vmax.f32 %v394, 0.0
    %v407 = vmax.f32 %v397, 0.0
    %v408 = vpack.c.bf16 %v401, %v400
    %v409 = vpack.c.bf16 %v403, %v402
    %v410 = vpack.c.bf16 %v405, %v404
    %v411 = vpack.c.bf16 %v407, %v406
    %v412 = vld [vmem:[#allocation3] sm:$0xff]
    %v413 = vld [vmem:[#allocation3 + $0x8] sm:$0xff]
    %v414 = vld [vmem:[#allocation3 + $0x10] sm:$0xff]
    %v415 = vld [vmem:[#allocation3 + $0x18] sm:$0xff]
    %v416 = vld [vmem:[#allocation3 + $0x20] sm:$0xff]
    %v417 = vld [vmem:[#allocation3 + $0x28] sm:$0xff]
    %v418 = vld [vmem:[#allocation3 + $0x30] sm:$0xff]
    %v419 = vld [vmem:[#allocation3 + $0x38] sm:$0xff]
    %v420 = vld [vmem:[#allocation3 + $0x40] sm:$0xff]
    %v421 = vld [vmem:[#allocation3 + $0x48] sm:$0xff]
    %v422 = vld [vmem:[#allocation3 + $0x50] sm:$0xff]
    %v423 = vld [vmem:[#allocation3 + $0x58] sm:$0xff]
    %v424 = vld [vmem:[#allocation3 + $0x60] sm:$0xff]
    %v425 = vld [vmem:[#allocation3 + $0x68] sm:$0xff]
    %v426 = vld [vmem:[#allocation3 + $0x70] sm:$0xff]
    %v427 = vld [vmem:[#allocation3 + $0x78] sm:$0xff]
    %v429 = vlaneseq
    %v430 = vshrl.u32 %v429, 7
    %v431 = vsub.s32 0, %v430
    %v432 = vrot.slane %v85, %v431
    %v433 = vlaneseq
    %v434 = vshrl.u32 %v433, 7
    %v435 = vsub.s32 1, %v434
    %v436 = vrot.slane %v85, %v435
    %v455 = vunpack.c.l.b16 %v412
    %v456 = vunpack.c.h.b16 %v412
    %v457 = vunpack.c.l.b16 %v413
    %v458 = vunpack.c.h.b16 %v413
    %v459 = vunpack.c.l.b16 %v414
    %v460 = vunpack.c.h.b16 %v414
    %v461 = vunpack.c.l.b16 %v415
    %v462 = vunpack.c.h.b16 %v415
    %v463 = vunpack.c.l.b16 %v416
    %v464 = vunpack.c.h.b16 %v416
    %v465 = vunpack.c.l.b16 %v417
    %v466 = vunpack.c.h.b16 %v417
    %v467 = vunpack.c.l.b16 %v418
    %v468 = vunpack.c.h.b16 %v418
    %v469 = vunpack.c.l.b16 %v419
    %v470 = vunpack.c.h.b16 %v419
    %v471 = vunpack.c.l.b16 %v420
    %v472 = vunpack.c.h.b16 %v420
    %v473 = vunpack.c.l.b16 %v421
    %v474 = vunpack.c.h.b16 %v421
    %v475 = vunpack.c.l.b16 %v422
    %v476 = vunpack.c.h.b16 %v422
    %v477 = vunpack.c.l.b16 %v423
    %v478 = vunpack.c.h.b16 %v423
    %v479 = vunpack.c.l.b16 %v424
    %v480 = vunpack.c.h.b16 %v424
    %v481 = vunpack.c.l.b16 %v425
    %v482 = vunpack.c.h.b16 %v425
    %v483 = vunpack.c.l.b16 %v426
    %v484 = vunpack.c.h.b16 %v426
    %v485 = vunpack.c.l.b16 %v427
    %v486 = vunpack.c.h.b16 %v427
    %v487 = vpack.c.b16 %v457, %v455
    %v488 = vpack.c.b16 %v458, %v456
    %v489 = vpack.c.b16 %v461, %v459
    %v490 = vpack.c.b16 %v462, %v460
    %v491 = vpack.c.b16 %v465, %v463
    %v492 = vpack.c.b16 %v466, %v464
    %v493 = vpack.c.b16 %v469, %v467
    %v494 = vpack.c.b16 %v470, %v468
    %v495 = vpack.c.b16 %v473, %v471
    %v496 = vpack.c.b16 %v474, %v472
    %v497 = vpack.c.b16 %v477, %v475
    %v498 = vpack.c.b16 %v478, %v476
    %v499 = vpack.c.b16 %v481, %v479
    %v500 = vpack.c.b16 %v482, %v480
    %v501 = vpack.c.b16 %v485, %v483
    %v502 = vpack.c.b16 %v486, %v484
    %519 = vmatprep.subr.bf16.mxu0 %v488
    %520 = vmatpush1.bf16.msra.mxu0 %v487
    %521 = vmatprep.subr.bf16.mxu0 %v490
    %522 = vmatpush1.bf16.msra.mxu0 %v489
    %523 = vmatprep.subr.bf16.mxu0 %v492
    %524 = vmatpush1.bf16.msra.mxu0 %v491
    %525 = vmatprep.subr.bf16.mxu0 %v494
    %526 = vmatpush1.bf16.msra.mxu0 %v493
    %527 = vmatprep.subr.bf16.mxu0 %v496
    %528 = vmatpush1.bf16.msra.mxu0 %v495
    %529 = vmatprep.subr.bf16.mxu0 %v498
    %530 = vmatpush1.bf16.msra.mxu0 %v497
    %531 = vmatprep.subr.bf16.mxu0 %v500
    %532 = vmatpush1.bf16.msra.mxu0 %v499
    %533 = vmatprep.subr.bf16.mxu0 %v502
    %534 = vmatpush1.bf16.msra.mxu0 %v501
    %535 = vmatprep.subr.bf16.mxu0 0
    %536 = vmatpush1.bf16.msra.mxu0 0
    %537 = vmatprep.subr.bf16.mxu0 0
    %538 = vmatpush1.bf16.msra.mxu0 0
    %539 = vmatprep.subr.bf16.mxu0 0
    %540 = vmatpush1.bf16.msra.mxu0 0
    %541 = vmatprep.subr.bf16.mxu0 0
    %542 = vmatpush1.bf16.msra.mxu0 0
    %543 = vmatprep.subr.bf16.mxu0 0
    %544 = vmatpush1.bf16.msra.mxu0 0
    %545 = vmatprep.subr.bf16.mxu0 0
    %546 = vmatpush1.bf16.msra.mxu0 0
    %547 = vmatprep.subr.bf16.mxu0 0
    %548 = vmatpush1.bf16.msra.mxu0 0
    %549 = vmatprep.subr.bf16.mxu0 0
    %550 = vmatpush1.bf16.msra.mxu0 0
    %551 = vmatprep.mubr.bf16.mxu0 0
    %552 = vmatmul.mubr.bf16.gmra.mrb[0].mxu0 %v408
    %v553 = vpop.f32.mrb[0].mxu0
    %v554 = vadd.f32 %v432, %v553
    %v555 = vpop.f32.mrb[0].mxu0
    %v556 = vadd.f32 %v436, %v555
    %v557 = vpop.f32.mrb[0].mxu0
    %v558 = vadd.f32 %v432, %v557
    %v559 = vpop.f32.mrb[0].mxu0
    %v560 = vadd.f32 %v436, %v559
    %561 = vmatprep.mubr.bf16.mxu0 0
    %562 = vmatmul.mubr.bf16.gmra.mrb[0].mxu0 %v409
    %v563 = vpop.f32.mrb[0].mxu0
    %v564 = vadd.f32 %v432, %v563
    %v565 = vpop.f32.mrb[0].mxu0
    %v566 = vadd.f32 %v436, %v565
    %v567 = vpop.f32.mrb[0].mxu0
    %v568 = vadd.f32 %v432, %v567
    %v569 = vpop.f32.mrb[0].mxu0
    %v570 = vadd.f32 %v436, %v569
    %571 = vmatprep.mubr.bf16.mxu0 0
    %572 = vmatmul.mubr.bf16.gmra.mrb[0].mxu0 %v410
    %v573 = vpop.f32.mrb[0].mxu0
    %v574 = vadd.f32 %v432, %v573
    %v575 = vpop.f32.mrb[0].mxu0
    %v576 = vadd.f32 %v436, %v575
    %v577 = vpop.f32.mrb[0].mxu0
    %v578 = vadd.f32 %v432, %v577
    %v579 = vpop.f32.mrb[0].mxu0
    %v580 = vadd.f32 %v436, %v579
    %581 = vmatprep.mubr.bf16.mxu0 0
    %582 = vmatmul.mubr.bf16.gmra.mrb[0].mxu0 %v411
    %v583 = vpop.f32.mrb[0].mxu0
    %v584 = vadd.f32 %v432, %v583
    %v585 = vpop.f32.mrb[0].mxu0
    %v586 = vadd.f32 %v436, %v585
    %v587 = vpop.f32.mrb[0].mxu0
    %v588 = vadd.f32 %v432, %v587
    %v589 = vpop.f32.mrb[0].mxu0
    %v590 = vadd.f32 %v436, %v589
    %591 = vdwg.mxu0
    %v592 = vmax.f32 %v554, 0.0
    %v593 = vmax.f32 %v556, 0.0
    %v594 = vmax.f32 %v558, 0.0
    %v595 = vmax.f32 %v560, 0.0
    %v596 = vmax.f32 %v564, 0.0
    %v597 = vmax.f32 %v566, 0.0
    %v598 = vmax.f32 %v568, 0.0
    %v599 = vmax.f32 %v570, 0.0
    %v600 = vmax.f32 %v574, 0.0
    %v601 = vmax.f32 %v576, 0.0
    %v602 = vmax.f32 %v578, 0.0
    %v603 = vmax.f32 %v580, 0.0
    %v604 = vmax.f32 %v584, 0.0
    %v605 = vmax.f32 %v586, 0.0
    %v606 = vmax.f32 %v588, 0.0
    %v607 = vmax.f32 %v590, 0.0
    %v608 = vmax.f32 %v592, %v594
    %v609 = vrot.slane %v608, 4
    %v610 = vmax.f32 %v608, %v609
    %v611 = vrot.slane %v610, 2
    %v612 = vmax.f32 %v610, %v611
    %v613 = vrot.slane %v612, 1
    %v614 = vmax.f32 %v612, %v613
    %v615 = vmax.f32 %v593, %v595
    %v616 = vrot.slane %v615, 4
    %v617 = vmax.f32 %v615, %v616
    %v618 = vrot.slane %v617, 2
    %v619 = vmax.f32 %v617, %v618
    %v620 = vrot.slane %v619, 1
    %v621 = vmax.f32 %v619, %v620
    %v622 = vmax.f32 %v596, %v598
    %v623 = vrot.slane %v622, 4
    %v624 = vmax.f32 %v622, %v623
    %v625 = vrot.slane %v624, 2
    %v626 = vmax.f32 %v624, %v625
    %v627 = vrot.slane %v626, 1
    %v628 = vmax.f32 %v626, %v627
    %v629 = vmax.f32 %v597, %v599
    %v630 = vrot.slane %v629, 4
    %v631 = vmax.f32 %v629, %v630
    %v632 = vrot.slane %v631, 2
    %v633 = vmax.f32 %v631, %v632
    %v634 = vrot.slane %v633, 1
    %v635 = vmax.f32 %v633, %v634
    %v636 = vmax.f32 %v600, %v602
    %v637 = vrot.slane %v636, 4
    %v638 = vmax.f32 %v636, %v637
    %v639 = vrot.slane %v638, 2
    %v640 = vmax.f32 %v638, %v639
    %v641 = vrot.slane %v640, 1
    %v642 = vmax.f32 %v640, %v641
    %v643 = vmax.f32 %v601, %v603
    %v644 = vrot.slane %v643, 4
    %v645 = vmax.f32 %v643, %v644
    %v646 = vrot.slane %v645, 2
    %v647 = vmax.f32 %v645, %v646
    %v648 = vrot.slane %v647, 1
    %v649 = vmax.f32 %v647, %v648
    %v650 = vmax.f32 %v604, %v606
    %v651 = vrot.slane %v650, 4
    %v652 = vmax.f32 %v650, %v651
    %v653 = vrot.slane %v652, 2
    %v654 = vmax.f32 %v652, %v653
    %v655 = vrot.slane %v654, 1
    %v656 = vmax.f32 %v654, %v655
    %v657 = vmax.f32 %v605, %v607
    %v658 = vrot.slane %v657, 4
    %v659 = vmax.f32 %v657, %v658
    %v660 = vrot.slane %v659, 2
    %v661 = vmax.f32 %v659, %v660
    %v662 = vrot.slane %v661, 1
    %v663 = vmax.f32 %v661, %v662
    %v664 = vmax.f32 %v614, %v642
    %v665 = vmax.f32 %v621, %v649
    %v666 = vmax.f32 %v628, %v656
    %v667 = vmax.f32 %v635, %v663
    %v668 = vpack.c.bf16 %v664, %v664
    %v669 = vpack.c.bf16 %v665, %v665
    %v670 = vpack.c.bf16 %v666, %v666
    %v671 = vpack.c.bf16 %v667, %v667
    %v672 = vld [vmem:[#allocation6] sm:$0xf]
    %v673 = vld [vmem:[#allocation6 + $0x4] sm:$0xf]
    %v674 = vld [vmem:[#allocation6 + $0x8] sm:$0xf]
    %v675 = vld [vmem:[#allocation6 + $0xc] sm:$0xf]
    %v676 = vld [vmem:[#allocation6 + $0x10] sm:$0xf]
    %v677 = vld [vmem:[#allocation6 + $0x14] sm:$0xf]
    %v678 = vld [vmem:[#allocation6 + $0x18] sm:$0xf]
    %v679 = vld [vmem:[#allocation6 + $0x1c] sm:$0xf]
    %v680 = vld [vmem:[#allocation6 + $0x20] sm:$0xf]
    %v681 = vld [vmem:[#allocation6 + $0x24] sm:$0xf]
    %v682 = vld [vmem:[#allocation6 + $0x28] sm:$0xf]
    %v683 = vld [vmem:[#allocation6 + $0x2c] sm:$0xf]
    %v684 = vld [vmem:[#allocation6 + $0x30] sm:$0xf]
    %v685 = vld [vmem:[#allocation6 + $0x34] sm:$0xf]
    %v686 = vld [vmem:[#allocation6 + $0x38] sm:$0xf]
    %v687 = vld [vmem:[#allocation6 + $0x3c] sm:$0xf]
    %v688 = vld [vmem:[#allocation6 + $0x40] sm:$0xf]
    %v689 = vld [vmem:[#allocation6 + $0x44] sm:$0xf]
    %v690 = vld [vmem:[#allocation6 + $0x48] sm:$0xf]
    %v691 = vld [vmem:[#allocation6 + $0x4c] sm:$0xf]
    %v692 = vld [vmem:[#allocation6 + $0x50] sm:$0xf]
    %v693 = vld [vmem:[#allocation6 + $0x54] sm:$0xf]
    %v694 = vld [vmem:[#allocation6 + $0x58] sm:$0xf]
    %v695 = vld [vmem:[#allocation6 + $0x5c] sm:$0xf]
    %v696 = vld [vmem:[#allocation6 + $0x60] sm:$0xf]
    %v697 = vld [vmem:[#allocation6 + $0x64] sm:$0xf]
    %v698 = vld [vmem:[#allocation6 + $0x68] sm:$0xf]
    %v699 = vld [vmem:[#allocation6 + $0x6c] sm:$0xf]
    %v700 = vld [vmem:[#allocation6 + $0x70] sm:$0xf]
    %v701 = vld [vmem:[#allocation6 + $0x74] sm:$0xf]
    %v702 = vld [vmem:[#allocation6 + $0x78] sm:$0xf]
    %v703 = vld [vmem:[#allocation6 + $0x7c] sm:$0xf]
    %v704 = vld [vmem:[%s10] sm:$0x1]
    %v706 = vlaneseq
    %v707 = vshrl.u32 %v706, 7
    %v708 = vsub.s32 0, %v707
    %v709 = vrot.slane %v704, %v708
    %v715 = vunpack.c.l.b16 %v668
    %v716 = vunpack.c.l.b16 %v669
    %v717 = vunpack.c.l.b16 %v670
    %v718 = vunpack.c.l.b16 %v671
    %vm719 = vcmask 1041409
    %v720 = vsel %vm719, %v717, %v715
    %v721 = vsel %vm719, %v718, %v716
    %v722 = vpack.c.b16 %v720, %v720
    %v723 = vpack.c.b16 %v721, %v721
    %v758 = vunpack.c.l.b16 %v672
    %v759 = vunpack.c.l.b16 %v673
    %v760 = vunpack.c.l.b16 %v674
    %v761 = vunpack.c.l.b16 %v675
    %v762 = vunpack.c.l.b16 %v676
    %v763 = vunpack.c.l.b16 %v677
    %v764 = vunpack.c.l.b16 %v678
    %v765 = vunpack.c.l.b16 %v679
    %v766 = vunpack.c.l.b16 %v680
    %v767 = vunpack.c.l.b16 %v681
    %v768 = vunpack.c.l.b16 %v682
    %v769 = vunpack.c.l.b16 %v683
    %v770 = vunpack.c.l.b16 %v684
    %v771 = vunpack.c.l.b16 %v685
    %v772 = vunpack.c.l.b16 %v686
    %v773 = vunpack.c.l.b16 %v687
    %v774 = vunpack.c.l.b16 %v688
    %v775 = vunpack.c.l.b16 %v689
    %v776 = vunpack.c.l.b16 %v690
    %v777 = vunpack.c.l.b16 %v691
    %v778 = vunpack.c.l.b16 %v692
    %v779 = vunpack.c.l.b16 %v693
    %v780 = vunpack.c.l.b16 %v694
    %v781 = vunpack.c.l.b16 %v695
    %v782 = vunpack.c.l.b16 %v696
    %v783 = vunpack.c.l.b16 %v697
    %v784 = vunpack.c.l.b16 %v698
    %v785 = vunpack.c.l.b16 %v699
    %v786 = vunpack.c.l.b16 %v700
    %v787 = vunpack.c.l.b16 %v701
    %v788 = vunpack.c.l.b16 %v702
    %v789 = vunpack.c.l.b16 %v703
    %v790 = vpack.c.b16 %v759, %v758
    %v791 = vpack.c.b16 %v761, %v760
    %v792 = vpack.c.b16 %v763, %v762
    %v793 = vpack.c.b16 %v765, %v764
    %v794 = vpack.c.b16 %v767, %v766
    %v795 = vpack.c.b16 %v769, %v768
    %v796 = vpack.c.b16 %v771, %v770
    %v797 = vpack.c.b16 %v773, %v772
    %v798 = vpack.c.b16 %v775, %v774
    %v799 = vpack.c.b16 %v777, %v776
    %v800 = vpack.c.b16 %v779, %v778
    %v801 = vpack.c.b16 %v781, %v780
    %v802 = vpack.c.b16 %v783, %v782
    %v803 = vpack.c.b16 %v785, %v784
    %v804 = vpack.c.b16 %v787, %v786
    %v805 = vpack.c.b16 %v789, %v788
    %822 = vmatprep.subr.bf16.mxu0 0
    %823 = vmatpush1.bf16.msra.mxu0 %v790
    %824 = vmatprep.subr.bf16.mxu0 0
    %825 = vmatpush1.bf16.msra.mxu0 %v791
    %826 = vmatprep.subr.bf16.mxu0 0
    %827 = vmatpush1.bf16.msra.mxu0 %v792
    %828 = vmatprep.subr.bf16.mxu0 0
    %829 = vmatpush1.bf16.msra.mxu0 %v793
    %830 = vmatprep.subr.bf16.mxu0 0
    %831 = vmatpush1.bf16.msra.mxu0 %v794
    %832 = vmatprep.subr.bf16.mxu0 0
    %833 = vmatpush1.bf16.msra.mxu0 %v795
    %834 = vmatprep.subr.bf16.mxu0 0
    %835 = vmatpush1.bf16.msra.mxu0 %v796
    %836 = vmatprep.subr.bf16.mxu0 0
    %837 = vmatpush1.bf16.msra.mxu0 %v797
    %838 = vmatprep.subr.bf16.mxu0 0
    %839 = vmatpush1.bf16.msra.mxu0 %v798
    %840 = vmatprep.subr.bf16.mxu0 0
    %841 = vmatpush1.bf16.msra.mxu0 %v799
    %842 = vmatprep.subr.bf16.mxu0 0
    %843 = vmatpush1.bf16.msra.mxu0 %v800
    %844 = vmatprep.subr.bf16.mxu0 0
    %845 = vmatpush1.bf16.msra.mxu0 %v801
    %846 = vmatprep.subr.bf16.mxu0 0
    %847 = vmatpush1.bf16.msra.mxu0 %v802
    %848 = vmatprep.subr.bf16.mxu0 0
    %849 = vmatpush1.bf16.msra.mxu0 %v803
    %850 = vmatprep.subr.bf16.mxu0 0
    %851 = vmatpush1.bf16.msra.mxu0 %v804
    %852 = vmatprep.subr.bf16.mxu0 0
    %853 = vmatpush1.bf16.msra.mxu0 %v805
    %854 = vmatprep.mubr.bf16.mxu0 %v723
    %855 = vmatmul.mubr.bf16.gmra.mrb[0].mxu0 %v722
    %v856 = vpop.f32.mrb[0].mxu0
    %v857 = vadd.f32 %v709, %v856
    %v858 = vpop.f32.mrb[0].mxu0
    %v859 = vpop.f32.mrb[0].mxu0
    %v860 = vpop.f32.mrb[0].mxu0
    %861 = vdwg.mxu0
    %v862 = vld [vmem:[%s2] sm:$0x3]
    %v863 = vpack.c.bf16 %v862, %v862
    %v864 = vld [vmem:[%s11] sm:$0xf]
    %v865 = vld [vmem:[%s11 + $0x4] sm:$0x1]
    %v866 = vld [vmem:[%s12] sm:$0x1]
    %v868 = vlaneseq
    %v869 = vshrl.u32 %v868, 7
    %v870 = vsub.s32 0, %v869
    %v871 = vrot.slane %v866, %v870
    %v875 = vunpack.c.l.b16 %v864
    %v876 = vunpack.c.l.b16 %v865
    %v877 = vpack.c.b16 %v876, %v875
    %vm878 = vcmask 80896
    %v880 = vsel %vm878, %v863, 0
    %vm882 = vcmask 1044480
    %v884 = vsel %vm882, %v877, 0
    %886 = vmatprep.subr.bf16.mxu0 0
    %887 = vmatpush1.bf16.msra.mxu0 %v884
    %888 = vmatprep.subr.bf16.mxu0 0
    %889 = vmatpush1.bf16.msra.mxu0 0
    %890 = vmatprep.subr.bf16.mxu0 0
    %891 = vmatpush1.bf16.msra.mxu0 0
    %892 = vmatprep.subr.bf16.mxu0 0
    %893 = vmatpush1.bf16.msra.mxu0 0
    %894 = vmatprep.subr.bf16.mxu0 0
    %895 = vmatpush1.bf16.msra.mxu0 0
    %896 = vmatprep.subr.bf16.mxu0 0
    %897 = vmatpush1.bf16.msra.mxu0 0
    %898 = vmatprep.subr.bf16.mxu0 0
    %899 = vmatpush1.bf16.msra.mxu0 0
    %900 = vmatprep.subr.bf16.mxu0 0
    %901 = vmatpush1.bf16.msra.mxu0 0
    %902 = vmatprep.subr.bf16.mxu0 0
    %903 = vmatpush1.bf16.msra.mxu0 0
    %904 = vmatprep.subr.bf16.mxu0 0
    %905 = vmatpush1.bf16.msra.mxu0 0
    %906 = vmatprep.subr.bf16.mxu0 0
    %907 = vmatpush1.bf16.msra.mxu0 0
    %908 = vmatprep.subr.bf16.mxu0 0
    %909 = vmatpush1.bf16.msra.mxu0 0
    %910 = vmatprep.subr.bf16.mxu0 0
    %911 = vmatpush1.bf16.msra.mxu0 0
    %912 = vmatprep.subr.bf16.mxu0 0
    %913 = vmatpush1.bf16.msra.mxu0 0
    %914 = vmatprep.subr.bf16.mxu0 0
    %915 = vmatpush1.bf16.msra.mxu0 0
    %916 = vmatprep.subr.bf16.mxu0 0
    %917 = vmatpush1.bf16.msra.mxu0 0
    %918 = vmatprep.mubr.bf16.mxu0 0
    %919 = vmatmul.mubr.bf16.gmra.mrb[0].mxu0 %v880
    %v920 = vpop.f32.mrb[0].mxu0
    %v921 = vadd.f32 %v871, %v920
    %v922 = vpop.f32.mrb[0].mxu0
    %v923 = vpop.f32.mrb[0].mxu0
    %v924 = vpop.f32.mrb[0].mxu0
    %925 = vdwg.mxu0
    %v926 = vmax.f32 %v921, 0.0
    %v927 = vpack.c.bf16 %v926, %v926
    %v928 = vld [vmem:[%s13] sm:$0xf]
    %v929 = vld [vmem:[%s13 + $0x4] sm:$0xf]
    %v930 = vld [vmem:[%s13 + $0x8] sm:$0xf]
    %v931 = vld [vmem:[%s13 + $0xc] sm:$0xf]
    %v932 = vld [vmem:[%s13 + $0x10] sm:$0xf]
    %v933 = vld [vmem:[%s13 + $0x14] sm:$0xf]
    %v934 = vld [vmem:[%s13 + $0x18] sm:$0xf]
    %v935 = vld [vmem:[%s13 + $0x1c] sm:$0xf]
    %v936 = vld [vmem:[%s14] sm:$0x1]
    %v938 = vlaneseq
    %v939 = vshrl.u32 %v938, 7
    %v940 = vsub.s32 0, %v939
    %v941 = vrot.slane %v936, %v940
    %v951 = vunpack.c.l.b16 %v928
    %v952 = vunpack.c.l.b16 %v929
    %v953 = vunpack.c.l.b16 %v930
    %v954 = vunpack.c.l.b16 %v931
    %v955 = vunpack.c.l.b16 %v932
    %v956 = vunpack.c.l.b16 %v933
    %v957 = vunpack.c.l.b16 %v934
    %v958 = vunpack.c.l.b16 %v935
    %v959 = vpack.c.b16 %v952, %v951
    %v960 = vpack.c.b16 %v954, %v953
    %v961 = vpack.c.b16 %v956, %v955
    %v962 = vpack.c.b16 %v958, %v957
    %v968 = vsel %vm190, %v927, 0
    %970 = vmatprep.subr.bf16.mxu0 0
    %971 = vmatpush1.bf16.msra.mxu0 %v959
    %972 = vmatprep.subr.bf16.mxu0 0
    %973 = vmatpush1.bf16.msra.mxu0 %v960
    %974 = vmatprep.subr.bf16.mxu0 0
    %975 = vmatpush1.bf16.msra.mxu0 %v961
    %976 = vmatprep.subr.bf16.mxu0 0
    %977 = vmatpush1.bf16.msra.mxu0 %v962
    %978 = vmatprep.subr.bf16.mxu0 0
    %979 = vmatpush1.bf16.msra.mxu0 0
    %980 = vmatprep.subr.bf16.mxu0 0
    %981 = vmatpush1.bf16.msra.mxu0 0
    %982 = vmatprep.subr.bf16.mxu0 0
    %983 = vmatpush1.bf16.msra.mxu0 0
    %984 = vmatprep.subr.bf16.mxu0 0
    %985 = vmatpush1.bf16.msra.mxu0 0
    %986 = vmatprep.subr.bf16.mxu0 0
    %987 = vmatpush1.bf16.msra.mxu0 0
    %988 = vmatprep.subr.bf16.mxu0 0
    %989 = vmatpush1.bf16.msra.mxu0 0
    %990 = vmatprep.subr.bf16.mxu0 0
    %991 = vmatpush1.bf16.msra.mxu0 0
    %992 = vmatprep.subr.bf16.mxu0 0
    %993 = vmatpush1.bf16.msra.mxu0 0
    %994 = vmatprep.subr.bf16.mxu0 0
    %995 = vmatpush1.bf16.msra.mxu0 0
    %996 = vmatprep.subr.bf16.mxu0 0
    %997 = vmatpush1.bf16.msra.mxu0 0
    %998 = vmatprep.subr.bf16.mxu0 0
    %999 = vmatpush1.bf16.msra.mxu0 0
    %1000 = vmatprep.subr.bf16.mxu0 0
    %1001 = vmatpush1.bf16.msra.mxu0 0
    %1002 = vmatprep.mubr.bf16.mxu0 0
    %1003 = vmatmul.mubr.bf16.gmra.mrb[0].mxu0 %v968
    %v1004 = vpop.f32.mrb[0].mxu0
    %v1005 = vadd.f32 %v941, %v1004
    %v1006 = vpop.f32.mrb[0].mxu0
    %v1007 = vpop.f32.mrb[0].mxu0
    %v1008 = vpop.f32.mrb[0].mxu0
    %1009 = vdwg.mxu0
    %1010 = vst [vmem:[#allocation8] sm:$0x3] %v857
    %vm1011 = vcmask 517120
    %1012 = vst.msk [vmem:[#allocation8 + $0x2] sm:$0x3] %vm1011, %v1005
    // Predicated region
    $region70: #{tpu_custom_call.1} parent=1 // pred_check
      _
    $region71: #{tpu_custom_call.1} parent=1 // pred_check_branch
      %1014 = sbr.rel (0) target = $region73
    $region72: #{tpu_custom_call.1} parent=1 // pred_region
      %s1016 = ssub.s32 64, 64
      %1017 = vsyncadd [#allocation5], %s1016
      %s1019 = sshll.u32 [#allocation8], 4
      %s1020 = int_to_ptr.vmem [resolvable:$true] %s1019
      %1022 = dma.vmem_to_hbm [thread:$0]  %s1020, 64, %s15, [#allocation5]
    $region73: #{tpu_custom_call.1} parent=1 // pred_fallthru
      _
    // Predicated region
    $region74: #{tpu_custom_call.1} parent=1 // pred_check
      _
    $region75: #{tpu_custom_call.1} parent=1 // pred_check_branch
      %1024 = sbr.rel (0) target = $region77
    $region76: #{tpu_custom_call.1} parent=1 // pred_region
      %1025 = dma.done [#allocation5], 64
    $region77: #{tpu_custom_call.1} parent=1 // pred_fallthru
      _
    %1026 = vsyncpa [#allocation4], 1
    %1027 = vsyncpa [#allocation7], 1
    %1028 = vsyncpa [#allocation5], 1

</llo_original>
